<compile_context>
chip_gen: v6e
topology: v6e:2x2x1
jax: 0.10.0
libtpu: 0.0.40
codegen_flags: <defaults>
</compile_context>

<pallas_src>
import jax
import jax.numpy as jnp
from jax.experimental import pallas as pl
from jax.experimental.pallas import tpu as pltpu


def _make_gcn_kernel(num_layers):
    """Build a kernel that runs all `num_layers` GCN layers for one batch tile.

    Block shapes per grid step:
      adj_ref : (BT, N, N)
      x_ref   : (BT, N, D)
      w_ref   : (L, D, D)   pre-transposed PyTorch Linear weights (x @ w == x @ W.T)
      b2_ref  : (L, 1, D)   already equals 2 * bias (the Linear is applied twice)
      o_ref   : (BT, N, D)
    """

    def kernel(adj_ref, x_ref, w_ref, b2_ref, o_ref):
        adj = adj_ref[...].astype(jnp.float32)            # (BT, N, N)
        h = x_ref[...].astype(jnp.float32)                # (BT, N, D)

        # denom = adj.sum(2, keepdims) + 1 -- constant across layers, so its
        # reciprocal is computed once per grid step.
        inv_denom = 1.0 / (jnp.sum(adj, axis=-1, keepdims=True) + 1.0)  # (BT,N,1)

        for l in range(num_layers):                       # static, L is small
            w = w_ref[l]                                  # (D, D)
            b2 = b2_ref[l]                                # (1, D) == 2*bias
            # Ax = adj @ h  (batched, MXU)
            ax = jnp.einsum('bij,bjd->bid', adj, h,
                            preferred_element_type=jnp.float32)
            # Folded linear: Linear(Ax) + Linear(h) == (Ax + h) @ W.T + 2b
            z = jnp.einsum('bnd,de->bne', ax + h, w,
                           preferred_element_type=jnp.float32)
            h = jnp.maximum((z + b2) * inv_denom, 0.0)    # ReLU(AxW / denom)

        o_ref[...] = h.astype(o_ref.dtype)

    return kernel


def base_gcn_forward(adj, x, w_stack, b_stack, *, batch_tile=None):
    """Run all GCN layers in a single pallas_call.

    adj      : (B, N, N) float32
    x        : (B, N, D) float32
    w_stack  : (L, D, D) pre-transposed Linear weights
    b_stack  : (L, 1, D) Linear biases
    """
    B, N, _ = adj.shape
    D = x.shape[-1]
    L = w_stack.shape[0]

    if batch_tile is None:
        batch_tile = 1
        for cand in (8, 4, 2, 1):
            if B % cand == 0:
                batch_tile = cand
                break
    BT = batch_tile
    assert B % BT == 0, "batch_tile must divide the batch size"

    # The same Linear is applied to Ax and to h, so the effective bias is 2*b.
    b2_stack = 2.0 * b_stack

    flops = 2 * B * L * (N * N * D + N * D * D)
    bytes_accessed = 4 * (adj.size + 2 * x.size + w_stack.size + b_stack.size)

    adj_spec = pl.BlockSpec((BT, N, N), lambda i: (i, 0, 0))
    feat_spec = pl.BlockSpec((BT, N, D), lambda i: (i, 0, 0))
    w_spec = pl.BlockSpec((L, D, D), lambda i: (0, 0, 0))
    b_spec = pl.BlockSpec((L, 1, D), lambda i: (0, 0, 0))

    return pl.pallas_call(
        _make_gcn_kernel(L),
        out_shape=jax.ShapeDtypeStruct((B, N, D), x.dtype),
        grid_spec=pltpu.PrefetchScalarGridSpec(
            num_scalar_prefetch=0,
            grid=(B // BT,),
            in_specs=[adj_spec, feat_spec, w_spec, b_spec],
            out_specs=feat_spec,
        ),
        compiler_params=pltpu.CompilerParams(
            dimension_semantics=("parallel",),
            vmem_limit_bytes=64 << 20),
        cost_estimate=pl.CostEstimate(
            flops=flops, transcendentals=0, bytes_accessed=bytes_accessed),
    )(adj, x, w_stack, b2_stack)


class BaseGraphConvLayerPallas:
    """Pallas implementation of BaseGraphConvLayer."""

    def __init__(self, mem_dim, layers, key):
        self.mem_dim = mem_dim
        self.layers = layers
        # One Linear(mem_dim, mem_dim) per layer, PyTorch default uniform init.
        bound = 1.0 / (mem_dim ** 0.5)
        ws, bs = [], []
        for _ in range(layers):
            key, kw, kb = jax.random.split(key, 3)
            w = jax.random.uniform(kw, (mem_dim, mem_dim), dtype=jnp.float32,
                                   minval=-bound, maxval=bound)
            b = jax.random.uniform(kb, (mem_dim,), dtype=jnp.float32,
                                   minval=-bound, maxval=bound)
            ws.append(w.T)          # store transposed so x @ w_t == x @ W.T
            bs.append(b)
        self.w_stack = jnp.stack(ws)                 # (L, D, D)
        self.b_stack = jnp.stack(bs)[:, None, :]     # (L, 1, D)

    def __call__(self, adj, gcn_inputs):
        return base_gcn_forward(adj, gcn_inputs, self.w_stack, self.b_stack)


def _reference(adj, x, w_stack, b_stack, layers):
    """Pure-JAX reference matching the PyTorch forward exactly (no folding)."""
    denom = adj.sum(2)[..., None] + 1.0
    out = x
    for l in range(layers):
        w = w_stack[l]              # (D_in, D_out) pre-transposed
        b = b_stack[l]              # (1, D)
        ax = jnp.einsum('bij,bjd->bid', adj, out)
        axw = (ax @ w + b) + (out @ w + b)
        out = jnp.maximum(axw / denom, 0.0)
    return out


if __name__ == "__main__":
    B, N, D = 2, 8, 32          # batch, nodes (seq len), mem_dim
    LAYERS = 2

    key = jax.random.PRNGKey(0)
    k_adj, k_x, k_params = jax.random.split(key, 3)

    # dependency-graph-like adjacency (0/1) and dense node features
    adj = (jax.random.uniform(k_adj, (B, N, N), dtype=jnp.float32) > 0.5
           ).astype(jnp.float32)
    gcn_inputs = jax.random.normal(k_x, (B, N, D), dtype=jnp.float32)

    model = BaseGraphConvLayerPallas(mem_dim=D, layers=LAYERS, key=k_params)

    out = jax.block_until_ready(model(adj, gcn_inputs))

    ref = _reference(adj, gcn_inputs, model.w_stack, model.b_stack, LAYERS)
    assert out.shape == (B, N, D)
    assert jnp.allclose(out, ref, atol=1e-4, rtol=1e-3), \
        float(jnp.max(jnp.abs(out - ref)))

    print("KERNEL_OK")
</pallas_src>

<mosaic_0001>
module attributes {stable_mosaic.version = 11 : i64} {
  func.func @kernel(%arg0: i32, %arg1: memref<2x8x8xf32, #tpu.memory_space<vmem>>, %arg2: memref<2x8x32xf32, #tpu.memory_space<vmem>>, %arg3: memref<2x32x32xf32, #tpu.memory_space<vmem>>, %arg4: memref<2x1x32xf32, #tpu.memory_space<vmem>>, %arg5: memref<2x8x32xf32, #tpu.memory_space<vmem>>) attributes {dimension_semantics = [#tpu.dimension_semantics<parallel>], iteration_bounds = array<i64: 1>, scalar_prefetch = 0 : i64, scratch_operands = 0 : i64, tpu.core_type = #tpu.core_type<tc>, window_params = [{transform_indices = @transform_0, window_bounds = array<i64: 2, 8, 8>}, {transform_indices = @transform_1, window_bounds = array<i64: 2, 8, 32>}, {pipeline_mode = #tpu.pipeline_mode<synchronous>, transform_indices = @transform_2, window_bounds = array<i64: 2, 32, 32>}, {pipeline_mode = #tpu.pipeline_mode<synchronous>, transform_indices = @transform_3, window_bounds = array<i64: 2, 1, 32>}, {transform_indices = @transform_4, window_bounds = array<i64: 2, 8, 32>}]} {
    %c0 = arith.constant 0 : index
    %c0_0 = arith.constant 0 : index
    %c0_1 = arith.constant 0 : index
    %0 = vector.load %arg1[%c0, %c0_0, %c0_1] : memref<2x8x8xf32, #tpu.memory_space<vmem>>, vector<2x8x8xf32>
    %c0_2 = arith.constant 0 : index
    %c0_3 = arith.constant 0 : index
    %c0_4 = arith.constant 0 : index
    %1 = vector.load %arg2[%c0_2, %c0_3, %c0_4] : memref<2x8x32xf32, #tpu.memory_space<vmem>>, vector<2x8x32xf32>
    %cst = arith.constant dense<0.000000e+00> : vector<2x8xf32>
    %2 = vector.multi_reduction <add>, %0, %cst [2] : vector<2x8x8xf32> to vector<2x8xf32>
    %3 = vector.shape_cast %2 : vector<2x8xf32> to vector<2x8x1xf32>
    %cst_5 = arith.constant 1.000000e+00 : f32
    %4 = vector.broadcast %cst_5 : f32 to vector<2x8x1xf32>
    %5 = arith.addf %3, %4 : vector<2x8x1xf32>
    %cst_6 = arith.constant 1.000000e+00 : f32
    %6 = vector.broadcast %cst_6 : f32 to vector<2x8x1xf32>
    %7 = arith.divf %6, %5 : vector<2x8x1xf32>
    %c0_7 = arith.constant 0 : index
    %c0_8 = arith.constant 0 : index
    %c0_9 = arith.constant 0 : index
    %8 = vector.load %arg3[%c0_7, %c0_8, %c0_9] : memref<2x32x32xf32, #tpu.memory_space<vmem>>, vector<1x32x32xf32>
    %9 = vector.shape_cast %8 : vector<1x32x32xf32> to vector<32x32xf32>
    %c0_10 = arith.constant 0 : index
    %c0_11 = arith.constant 0 : index
    %c0_12 = arith.constant 0 : index
    %10 = vector.load %arg4[%c0_10, %c0_11, %c0_12] : memref<2x1x32xf32, #tpu.memory_space<vmem>>, vector<1x1x32xf32>
    %11 = vector.shape_cast %10 : vector<1x1x32xf32> to vector<1x32xf32>
    "tpu.trace_start"() <{level = 10 : i32, message = "bij,bjd->bid"}> : () -> ()
    %cst_13 = arith.constant dense<0.000000e+00> : vector<2x8x32xf32>
    %12 = tpu.matmul %0, %1, %cst_13 {dimension_numbers = #tpu.dot_dimension_numbers<[2], [1], [1], [2], [0, 0, 0, 1, 1, 2], [0], [0]>} : vector<2x8x8xf32>, vector<2x8x32xf32>, vector<2x8x32xf32> -> vector<2x8x32xf32>
    "tpu.trace_stop"() : () -> ()
    %13 = arith.addf %12, %1 : vector<2x8x32xf32>
    "tpu.trace_start"() <{level = 10 : i32, message = "bnd,de->bne"}> : () -> ()
    %cst_14 = arith.constant dense<0.000000e+00> : vector<2x8x32xf32>
    %14 = tpu.matmul %13, %9, %cst_14 {dimension_numbers = #tpu.dot_dimension_numbers<[2], [0], [0, 1], [1], [0, 0, 0, 1, 1, 1], [], []>} : vector<2x8x32xf32>, vector<32x32xf32>, vector<2x8x32xf32> -> vector<2x8x32xf32>
    "tpu.trace_stop"() : () -> ()
    %15 = vector.shape_cast %11 : vector<1x32xf32> to vector<1x1x32xf32>
    %16 = vector.broadcast %15 : vector<1x1x32xf32> to vector<2x8x32xf32>
    %17 = arith.addf %14, %16 : vector<2x8x32xf32>
    %18 = vector.broadcast %7 : vector<2x8x1xf32> to vector<2x8x32xf32>
    %19 = arith.mulf %17, %18 : vector<2x8x32xf32>
    %cst_15 = arith.constant 0.000000e+00 : f32
    %20 = vector.broadcast %cst_15 : f32 to vector<2x8x32xf32>
    %21 = arith.maximumf %19, %20 : vector<2x8x32xf32>
    %c1 = arith.constant 1 : index
    %c0_16 = arith.constant 0 : index
    %c0_17 = arith.constant 0 : index
    %22 = vector.load %arg3[%c1, %c0_16, %c0_17] : memref<2x32x32xf32, #tpu.memory_space<vmem>>, vector<1x32x32xf32>
    %23 = vector.shape_cast %22 : vector<1x32x32xf32> to vector<32x32xf32>
    %c1_18 = arith.constant 1 : index
    %c0_19 = arith.constant 0 : index
    %c0_20 = arith.constant 0 : index
    %24 = vector.load %arg4[%c1_18, %c0_19, %c0_20] : memref<2x1x32xf32, #tpu.memory_space<vmem>>, vector<1x1x32xf32>
    %25 = vector.shape_cast %24 : vector<1x1x32xf32> to vector<1x32xf32>
    "tpu.trace_start"() <{level = 10 : i32, message = "bij,bjd->bid"}> : () -> ()
    %cst_21 = arith.constant dense<0.000000e+00> : vector<2x8x32xf32>
    %26 = tpu.matmul %0, %21, %cst_21 {dimension_numbers = #tpu.dot_dimension_numbers<[2], [1], [1], [2], [0, 0, 0, 1, 1, 2], [0], [0]>} : vector<2x8x8xf32>, vector<2x8x32xf32>, vector<2x8x32xf32> -> vector<2x8x32xf32>
    "tpu.trace_stop"() : () -> ()
    %27 = arith.addf %26, %21 : vector<2x8x32xf32>
    "tpu.trace_start"() <{level = 10 : i32, message = "bnd,de->bne"}> : () -> ()
    %cst_22 = arith.constant dense<0.000000e+00> : vector<2x8x32xf32>
    %28 = tpu.matmul %27, %23, %cst_22 {dimension_numbers = #tpu.dot_dimension_numbers<[2], [0], [0, 1], [1], [0, 0, 0, 1, 1, 1], [], []>} : vector<2x8x32xf32>, vector<32x32xf32>, vector<2x8x32xf32> -> vector<2x8x32xf32>
    "tpu.trace_stop"() : () -> ()
    %29 = vector.shape_cast %25 : vector<1x32xf32> to vector<1x1x32xf32>
    %30 = vector.broadcast %29 : vector<1x1x32xf32> to vector<2x8x32xf32>
    %31 = arith.addf %28, %30 : vector<2x8x32xf32>
    %32 = vector.broadcast %7 : vector<2x8x1xf32> to vector<2x8x32xf32>
    %33 = arith.mulf %31, %32 : vector<2x8x32xf32>
    %cst_23 = arith.constant 0.000000e+00 : f32
    %34 = vector.broadcast %cst_23 : f32 to vector<2x8x32xf32>
    %35 = arith.maximumf %33, %34 : vector<2x8x32xf32>
    %c0_24 = arith.constant 0 : index
    %c0_25 = arith.constant 0 : index
    %c0_26 = arith.constant 0 : index
    %36 = vector.load %arg5[%c0_24, %c0_25, %c0_26] : memref<2x8x32xf32, #tpu.memory_space<vmem>>, vector<2x8x32xf32>
    tpu.vector_store %arg5[%c0_24, %c0_25, %c0_26], %35 {strides = array<i32>} : memref<2x8x32xf32, #tpu.memory_space<vmem>>, vector<2x8x32xf32>,
    return
  }
  func.func @transform_0(%arg0: i32) -> (i32, i32, i32) {
    %c0_i32 = arith.constant 0 : i32
    %c0_i32_0 = arith.constant 0 : i32
    %c0_i32_1 = arith.constant 0 : i32
    return %arg0, %c0_i32, %c0_i32_0 : i32, i32, i32
  }
  func.func @transform_1(%arg0: i32) -> (i32, i32, i32) {
    %c0_i32 = arith.constant 0 : i32
    %c0_i32_0 = arith.constant 0 : i32
    %c0_i32_1 = arith.constant 0 : i32
    return %arg0, %c0_i32, %c0_i32_0 : i32, i32, i32
  }
  func.func @transform_2(%arg0: i32) -> (i32, i32, i32) {
    %c0_i32 = arith.constant 0 : i32
    %c0_i32_0 = arith.constant 0 : i32
    %c0_i32_1 = arith.constant 0 : i32
    %c0_i32_2 = arith.constant 0 : i32
    return %c0_i32, %c0_i32_0, %c0_i32_1 : i32, i32, i32
  }
  func.func @transform_3(%arg0: i32) -> (i32, i32, i32) {
    %c0_i32 = arith.constant 0 : i32
    %c0_i32_0 = arith.constant 0 : i32
    %c0_i32_1 = arith.constant 0 : i32
    %c0_i32_2 = arith.constant 0 : i32
    return %c0_i32, %c0_i32_0, %c0_i32_1 : i32, i32, i32
  }
  func.func @transform_4(%arg0: i32) -> (i32, i32, i32) {
    %c0_i32 = arith.constant 0 : i32
    %c0_i32_0 = arith.constant 0 : i32
    %c0_i32_1 = arith.constant 0 : i32
    return %arg0, %c0_i32, %c0_i32_0 : i32, i32, i32
  }
}

</mosaic_0001>

<llo_original>
// kernel: tpu_custom_call.1
$region0: #{tpu_custom_call.1}
  #allocation0 [shape = 'u32[]', space=smem, size = 0x4, offset = 0x4, fixed_abs, tag = 'smem constant byte address 0x4 - core index']
  #allocation1 [shape = 'u32[144,128]{1,0:T(1,128)}', space=vmem, size = 0x12000, scoped, tag = 'internal scratch']
  %s0 = inlined_call_operand.hbm [shape: f32[2,8,8], index: 0, kind: input, shape index: {}]
  %s1 = inlined_call_operand.hbm [shape: f32[2,8,32], index: 1, kind: input, shape index: {}]
  %s2 = inlined_call_operand.hbm [shape: f32[2,32,32], index: 2, kind: input, shape index: {}]
  %s3 = inlined_call_operand.vmem [shape: f32[2,1,32], index: 3, kind: input, shape index: {}]
  %s4 = inlined_call_operand.hbm [shape: f32[2,8,32], index: 4, kind: output, shape index: {}]
  %s5 = sld [smem:[#allocation0]]
  $region38: #{tpu_custom_call.1} parent=0
    _
  %s7 = ssub.s32 1, %s5
  %s8 = scalar_select 0, %s7, %s5
  $region1: #{tpu_custom_call.1} parent=0
    #allocation2 [shape = 'u8[8192]{0}', space=vmem, size = 0x2000, scoped, tag = 'input window, operand 0, single buffered']
    #allocation3 [shape = 's32[1]{0}', space=sflag, size = 0x4, scoped, tag = 'scoped memory for tpu_custom_call.1']
    #allocation4 [shape = 's32[1]{0}', space=sflag, size = 0x4, scoped, tag = 'scoped memory for tpu_custom_call.1']
    #allocation5 [shape = 'u8[8192]{0}', space=vmem, size = 0x2000, scoped, tag = 'input window, operand 1, single buffered']
    #allocation6 [shape = 's32[1]{0}', space=sflag, size = 0x4, scoped, tag = 'scoped memory for tpu_custom_call.1']
    #allocation7 [shape = 'u8[32768]{0}', space=vmem, size = 0x8000, scoped, tag = 'input window, operand 2, single buffered']
    #allocation8 [shape = 'u8[8192]{0}', space=vmem, size = 0x2000, scoped, tag = 'output window, operand 0, single buffered']
    %9 = vsyncpa [#allocation3], 0
    %10 = vsyncpa [#allocation6], 0
    %11 = vsyncpa [#allocation4], 0
    // Predicated region
    $region2: #{tpu_custom_call.1} parent=1 // pred_check
      _
    $region3: #{tpu_custom_call.1} parent=1 // pred_check_branch
      %13 = sbr.rel (0) target = $region5
    $region4: #{tpu_custom_call.1} parent=1 // pred_region
      %s15 = ssub.s32 256, 256
      %16 = vsyncadd [#allocation3], %s15
      %s17 = sshll.u32 [#allocation2], 4
      %s18 = int_to_ptr.vmem [resolvable:$true] %s17
      %23 = dma.hbm_to_vmem [thread:$0]  %s0, 256, %s18, [#allocation3], 128, 128, 8
    $region5: #{tpu_custom_call.1} parent=1 // pred_fallthru
      _
    // Predicated region
    $region6: #{tpu_custom_call.1} parent=1 // pred_check
      _
    $region7: #{tpu_custom_call.1} parent=1 // pred_check_branch
      %25 = sbr.rel (0) target = $region9
    $region8: #{tpu_custom_call.1} parent=1 // pred_region
      %s27 = ssub.s32 256, 256
      %28 = vsyncadd [#allocation6], %s27
      %s29 = sshll.u32 [#allocation5], 4
      %s30 = int_to_ptr.vmem [resolvable:$true] %s29
      %35 = dma.hbm_to_vmem [thread:$0]  %s1, 256, %s30, [#allocation6], 128, 128, 8
    $region9: #{tpu_custom_call.1} parent=1 // pred_fallthru
      _
    // Predicated region
    $region10: #{tpu_custom_call.1} parent=1 // pred_check
      _
    $region11: #{tpu_custom_call.1} parent=1 // pred_check_branch
      %37 = sbr.rel (0) target = $region13
    $region12: #{tpu_custom_call.1} parent=1 // pred_region
      %s39 = ssub.s32 1024, 1024
      %40 = vsyncadd [#allocation6], %s39
      %s41 = sshll.u32 [#allocation7], 4
      %s42 = int_to_ptr.vmem [resolvable:$true] %s41
      %47 = dma.hbm_to_vmem [thread:$0]  %s2, 1024, %s42, [#allocation6], 128, 128, 8
    $region13: #{tpu_custom_call.1} parent=1 // pred_fallthru
      _
    // Predicated region
    $region14: #{tpu_custom_call.1} parent=1 // pred_check
      _
    $region15: #{tpu_custom_call.1} parent=1 // pred_check_branch
      %49 = sbr.rel (0) target = $region17
    $region16: #{tpu_custom_call.1} parent=1 // pred_region
      _
    $region17: #{tpu_custom_call.1} parent=1 // pred_fallthru
      _
    // Predicated region
    $region18: #{tpu_custom_call.1} parent=1 // pred_check
      _
    $region19: #{tpu_custom_call.1} parent=1 // pred_check_branch
      %51 = sbr.rel (0) target = $region21
    $region20: #{tpu_custom_call.1} parent=1 // pred_region
      %52 = dma.done [#allocation3], 256
    $region21: #{tpu_custom_call.1} parent=1 // pred_fallthru
      _
    // Predicated region
    $region22: #{tpu_custom_call.1} parent=1 // pred_check
      _
    $region23: #{tpu_custom_call.1} parent=1 // pred_check_branch
      %54 = sbr.rel (0) target = $region25
    $region24: #{tpu_custom_call.1} parent=1 // pred_region
      %55 = dma.done [#allocation6], 256
    $region25: #{tpu_custom_call.1} parent=1 // pred_fallthru
      _
    // Predicated region
    $region26: #{tpu_custom_call.1} parent=1 // pred_check
      _
    $region27: #{tpu_custom_call.1} parent=1 // pred_check_branch
      %57 = sbr.rel (0) target = $region29
    $region28: #{tpu_custom_call.1} parent=1 // pred_region
      %58 = dma.done [#allocation6], 1024
    $region29: #{tpu_custom_call.1} parent=1 // pred_fallthru
      _
    %v59 = vld [vmem:[#allocation2] sm:$0xff]
    %v60 = vld [vmem:[#allocation2 + $0x8] sm:$0xff]
    %v61 = vld [vmem:[#allocation5] sm:$0xff]
    %v62 = vld [vmem:[#allocation5 + $0x8] sm:$0xff]
    %vm63 = vcmask 64512
    %v64 = vsel %vm63, %v59, 0.0
    %65 = vadd.xlane.f32.xlu0 %v64
    %v66 = vpop.xlane.xlu0 %65
    %v67 = vsel %vm63, %v60, 0.0
    %68 = vadd.xlane.f32.xlu0 %v67
    %v69 = vpop.xlane.xlu0 %68
    %v70 = vadd.f32 %v66, 1.0
    %v71 = vadd.f32 %v69, 1.0
    %v72 = vrcp.pop %v70
    %v73 = vmul.f32 1.0, %v72
    %v74 = vrcp.pop %v71
    %v75 = vmul.f32 1.0, %v74
    %v76 = vld [vmem:[#allocation7] sm:$0xff]
    %v77 = vld [vmem:[#allocation7 + $0x8] sm:$0xff]
    %v78 = vld [vmem:[#allocation7 + $0x10] sm:$0xff]
    %v79 = vld [vmem:[#allocation7 + $0x18] sm:$0xff]
    %v80 = vld [vmem:[%s3] sm:$0x1]
    %v82 = vsel %vm63, %v59, 0
    %84 = vmatprep.subr.mxu0 0.0
    %85 = vmatpush1.msra.mxu0 0.0
    %86 = vmatprep.subr.mxu0 0.0
    %87 = vmatpush1.msra.mxu0 0.0
    %88 = vmatprep.subr.mxu0 0.0
    %89 = vmatpush1.msra.mxu0 0.0
    %90 = vmatprep.subr.mxu0 0.0
    %91 = vmatpush1.msra.mxu0 0.0
    %92 = vmatprep.subr.mxu0 0.0
    %93 = vmatpush1.msra.mxu0 0.0
    %94 = vmatprep.subr.mxu0 0.0
    %95 = vmatpush1.msra.mxu0 0.0
    %96 = vmatprep.subr.mxu0 0.0
    %97 = vmatpush1.msra.mxu0 0.0
    %98 = vmatprep.subr.mxu0 0.0
    %99 = vmatpush1.msra.mxu0 0.0
    %100 = vmatprep.subr.mxu0 0.0
    %101 = vmatpush1.msra.mxu0 0.0
    %102 = vmatprep.subr.mxu0 0.0
    %103 = vmatpush1.msra.mxu0 0.0
    %104 = vmatprep.subr.mxu0 0.0
    %105 = vmatpush1.msra.mxu0 0.0
    %106 = vmatprep.subr.mxu0 0.0
    %107 = vmatpush1.msra.mxu0 0.0
    %108 = vmatprep.subr.mxu0 0.0
    %109 = vmatpush1.msra.mxu0 0.0
    %110 = vmatprep.subr.mxu0 0.0
    %111 = vmatpush1.msra.mxu0 0.0
    %112 = vmatprep.subr.mxu0 0.0
    %113 = vmatpush1.msra.mxu0 0.0
    %114 = vmatprep.subr.mxu0 0.0
    %115 = vmatpush1.msra.mxu0 %v61
    %116 = vmatprep.subr.mxu0 0.0
    %117 = vmatpush2.msra.mxu0 0.0
    %118 = vmatprep.subr.mxu0 0.0
    %119 = vmatpush2.msra.mxu0 0.0
    %120 = vmatprep.subr.mxu0 0.0
    %121 = vmatpush2.msra.mxu0 0.0
    %122 = vmatprep.subr.mxu0 0.0
    %123 = vmatpush2.msra.mxu0 0.0
    %124 = vmatprep.subr.mxu0 0.0
    %125 = vmatpush2.msra.mxu0 0.0
    %126 = vmatprep.subr.mxu0 0.0
    %127 = vmatpush2.msra.mxu0 0.0
    %128 = vmatprep.subr.mxu0 0.0
    %129 = vmatpush2.msra.mxu0 0.0
    %130 = vmatprep.subr.mxu0 0.0
    %131 = vmatpush2.msra.mxu0 0.0
    %132 = vmatprep.subr.mxu0 0.0
    %133 = vmatpush2.msra.mxu0 0.0
    %134 = vmatprep.subr.mxu0 0.0
    %135 = vmatpush2.msra.mxu0 0.0
    %136 = vmatprep.subr.mxu0 0.0
    %137 = vmatpush2.msra.mxu0 0.0
    %138 = vmatprep.subr.mxu0 0.0
    %139 = vmatpush2.msra.mxu0 0.0
    %140 = vmatprep.subr.mxu0 0.0
    %141 = vmatpush2.msra.mxu0 0.0
    %142 = vmatprep.subr.mxu0 0.0
    %143 = vmatpush2.msra.mxu0 0.0
    %144 = vmatprep.subr.mxu0 0.0
    %145 = vmatpush2.msra.mxu0 0.0
    %146 = vmatprep.subr.mxu0 0.0
    %147 = vmatpush2.msra.mxu0 0.0
    %148 = vmatprep.mubr.f32.mxu0 0.0
    %149 = vmatmul.mubr.f32.gmra.mxu0 %v82
    %v150 = vpop.f32.mrf.mxu0
    %v151 = vadd.f32 %v61, %v150
    %v152 = vpop.f32.mrf.mxu0
    %153 = vdwg.mxu0
    %v155 = vsel %vm63, %v60, 0
    %157 = vmatprep.subr.mxu0 0.0
    %158 = vmatpush1.msra.mxu0 0.0
    %159 = vmatprep.subr.mxu0 0.0
    %160 = vmatpush1.msra.mxu0 0.0
    %161 = vmatprep.subr.mxu0 0.0
    %162 = vmatpush1.msra.mxu0 0.0
    %163 = vmatprep.subr.mxu0 0.0
    %164 = vmatpush1.msra.mxu0 0.0
    %165 = vmatprep.subr.mxu0 0.0
    %166 = vmatpush1.msra.mxu0 0.0
    %167 = vmatprep.subr.mxu0 0.0
    %168 = vmatpush1.msra.mxu0 0.0
    %169 = vmatprep.subr.mxu0 0.0
    %170 = vmatpush1.msra.mxu0 0.0
    %171 = vmatprep.subr.mxu0 0.0
    %172 = vmatpush1.msra.mxu0 0.0
    %173 = vmatprep.subr.mxu0 0.0
    %174 = vmatpush1.msra.mxu0 0.0
    %175 = vmatprep.subr.mxu0 0.0
    %176 = vmatpush1.msra.mxu0 0.0
    %177 = vmatprep.subr.mxu0 0.0
    %178 = vmatpush1.msra.mxu0 0.0
    %179 = vmatprep.subr.mxu0 0.0
    %180 = vmatpush1.msra.mxu0 0.0
    %181 = vmatprep.subr.mxu0 0.0
    %182 = vmatpush1.msra.mxu0 0.0
    %183 = vmatprep.subr.mxu0 0.0
    %184 = vmatpush1.msra.mxu0 0.0
    %185 = vmatprep.subr.mxu0 0.0
    %186 = vmatpush1.msra.mxu0 0.0
    %187 = vmatprep.subr.mxu0 0.0
    %188 = vmatpush1.msra.mxu0 %v62
    %189 = vmatprep.subr.mxu0 0.0
    %190 = vmatpush2.msra.mxu0 0.0
    %191 = vmatprep.subr.mxu0 0.0
    %192 = vmatpush2.msra.mxu0 0.0
    %193 = vmatprep.subr.mxu0 0.0
    %194 = vmatpush2.msra.mxu0 0.0
    %195 = vmatprep.subr.mxu0 0.0
    %196 = vmatpush2.msra.mxu0 0.0
    %197 = vmatprep.subr.mxu0 0.0
    %198 = vmatpush2.msra.mxu0 0.0
    %199 = vmatprep.subr.mxu0 0.0
    %200 = vmatpush2.msra.mxu0 0.0
    %201 = vmatprep.subr.mxu0 0.0
    %202 = vmatpush2.msra.mxu0 0.0
    %203 = vmatprep.subr.mxu0 0.0
    %204 = vmatpush2.msra.mxu0 0.0
    %205 = vmatprep.subr.mxu0 0.0
    %206 = vmatpush2.msra.mxu0 0.0
    %207 = vmatprep.subr.mxu0 0.0
    %208 = vmatpush2.msra.mxu0 0.0
    %209 = vmatprep.subr.mxu0 0.0
    %210 = vmatpush2.msra.mxu0 0.0
    %211 = vmatprep.subr.mxu0 0.0
    %212 = vmatpush2.msra.mxu0 0.0
    %213 = vmatprep.subr.mxu0 0.0
    %214 = vmatpush2.msra.mxu0 0.0
    %215 = vmatprep.subr.mxu0 0.0
    %216 = vmatpush2.msra.mxu0 0.0
    %217 = vmatprep.subr.mxu0 0.0
    %218 = vmatpush2.msra.mxu0 0.0
    %219 = vmatprep.subr.mxu0 0.0
    %220 = vmatpush2.msra.mxu0 0.0
    %221 = vmatprep.mubr.f32.mxu0 0.0
    %222 = vmatmul.mubr.f32.gmra.mxu0 %v155
    %v223 = vpop.f32.mrf.mxu0
    %v224 = vadd.f32 %v62, %v223
    %v225 = vpop.f32.mrf.mxu0
    %226 = vdwg.mxu0
    %v228 = vlaneseq
    %v229 = vshrl.u32 %v228, 7
    %v230 = vsub.s32 0, %v229
    %v231 = vrot.slane %v80, %v230
    %vm233 = vcmask 261120
    %v235 = vsel %vm233, %v151, 0
    %v238 = vsel %vm233, %v224, 0
    %240 = vmatprep.subr.mxu0 0.0
    %241 = vmatpush1.msra.mxu0 0.0
    %242 = vmatprep.subr.mxu0 0.0
    %243 = vmatpush1.msra.mxu0 0.0
    %244 = vmatprep.subr.mxu0 0.0
    %245 = vmatpush1.msra.mxu0 0.0
    %246 = vmatprep.subr.mxu0 0.0
    %247 = vmatpush1.msra.mxu0 0.0
    %248 = vmatprep.subr.mxu0 0.0
    %249 = vmatpush1.msra.mxu0 0.0
    %250 = vmatprep.subr.mxu0 0.0
    %251 = vmatpush1.msra.mxu0 0.0
    %252 = vmatprep.subr.mxu0 0.0
    %253 = vmatpush1.msra.mxu0 0.0
    %254 = vmatprep.subr.mxu0 0.0
    %255 = vmatpush1.msra.mxu0 0.0
    %256 = vmatprep.subr.mxu0 0.0
    %257 = vmatpush1.msra.mxu0 0.0
    %258 = vmatprep.subr.mxu0 0.0
    %259 = vmatpush1.msra.mxu0 0.0
    %260 = vmatprep.subr.mxu0 0.0
    %261 = vmatpush1.msra.mxu0 0.0
    %262 = vmatprep.subr.mxu0 0.0
    %263 = vmatpush1.msra.mxu0 0.0
    %264 = vmatprep.subr.mxu0 0.0
    %265 = vmatpush1.msra.mxu0 %v79
    %266 = vmatprep.subr.mxu0 0.0
    %267 = vmatpush1.msra.mxu0 %v78
    %268 = vmatprep.subr.mxu0 0.0
    %269 = vmatpush1.msra.mxu0 %v77
    %270 = vmatprep.subr.mxu0 0.0
    %271 = vmatpush1.msra.mxu0 %v76
    %272 = vmatprep.subr.mxu0 0.0
    %273 = vmatpush2.msra.mxu0 0.0
    %274 = vmatprep.subr.mxu0 0.0
    %275 = vmatpush2.msra.mxu0 0.0
    %276 = vmatprep.subr.mxu0 0.0
    %277 = vmatpush2.msra.mxu0 0.0
    %278 = vmatprep.subr.mxu0 0.0
    %279 = vmatpush2.msra.mxu0 0.0
    %280 = vmatprep.subr.mxu0 0.0
    %281 = vmatpush2.msra.mxu0 0.0
    %282 = vmatprep.subr.mxu0 0.0
    %283 = vmatpush2.msra.mxu0 0.0
    %284 = vmatprep.subr.mxu0 0.0
    %285 = vmatpush2.msra.mxu0 0.0
    %286 = vmatprep.subr.mxu0 0.0
    %287 = vmatpush2.msra.mxu0 0.0
    %288 = vmatprep.subr.mxu0 0.0
    %289 = vmatpush2.msra.mxu0 0.0
    %290 = vmatprep.subr.mxu0 0.0
    %291 = vmatpush2.msra.mxu0 0.0
    %292 = vmatprep.subr.mxu0 0.0
    %293 = vmatpush2.msra.mxu0 0.0
    %294 = vmatprep.subr.mxu0 0.0
    %295 = vmatpush2.msra.mxu0 0.0
    %296 = vmatprep.subr.mxu0 0.0
    %297 = vmatpush2.msra.mxu0 0.0
    %298 = vmatprep.subr.mxu0 0.0
    %299 = vmatpush2.msra.mxu0 0.0
    %300 = vmatprep.subr.mxu0 0.0
    %301 = vmatpush2.msra.mxu0 0.0
    %302 = vmatprep.subr.mxu0 0.0
    %303 = vmatpush2.msra.mxu0 0.0
    %304 = vmatprep.mubr.f32.mxu0 0.0
    %305 = vmatmul.mubr.f32.gmra.mxu0 %v235
    %v306 = vpop.f32.mrf.mxu0
    %v307 = vadd.f32 %v231, %v306
    %v308 = vpop.f32.mrf.mxu0
    %309 = vmatprep.mubr.f32.mxu0 0.0
    %310 = vmatmul.mubr.f32.gmra.mxu0 %v238
    %v311 = vpop.f32.mrf.mxu0
    %v312 = vadd.f32 %v231, %v311
    %v313 = vpop.f32.mrf.mxu0
    %314 = vdwg.mxu0
    %v315 = vmul.f32 %v307, %v73
    %v316 = vmul.f32 %v312, %v75
    %v317 = vmax.f32 %v315, 0.0
    %v318 = vmax.f32 %v316, 0.0
    %s319 = scalar_lea.vmem [#allocation7], 32
    %v320 = vld [vmem:[%s319] sm:$0xff]
    %v321 = vld [vmem:[%s319 + $0x8] sm:$0xff]
    %v322 = vld [vmem:[%s319 + $0x10] sm:$0xff]
    %v323 = vld [vmem:[%s319 + $0x18] sm:$0xff]
    %s324 = scalar_lea.vmem %s3, 1
    %v325 = vld [vmem:[%s324] sm:$0x1]
    %326 = vmatprep.subr.mxu0 0.0
    %327 = vmatpush1.msra.mxu0 0.0
    %328 = vmatprep.subr.mxu0 0.0
    %329 = vmatpush1.msra.mxu0 0.0
    %330 = vmatprep.subr.mxu0 0.0
    %331 = vmatpush1.msra.mxu0 0.0
    %332 = vmatprep.subr.mxu0 0.0
    %333 = vmatpush1.msra.mxu0 0.0
    %334 = vmatprep.subr.mxu0 0.0
    %335 = vmatpush1.msra.mxu0 0.0
    %336 = vmatprep.subr.mxu0 0.0
    %337 = vmatpush1.msra.mxu0 0.0
    %338 = vmatprep.subr.mxu0 0.0
    %339 = vmatpush1.msra.mxu0 0.0
    %340 = vmatprep.subr.mxu0 0.0
    %341 = vmatpush1.msra.mxu0 0.0
    %342 = vmatprep.subr.mxu0 0.0
    %343 = vmatpush1.msra.mxu0 0.0
    %344 = vmatprep.subr.mxu0 0.0
    %345 = vmatpush1.msra.mxu0 0.0
    %346 = vmatprep.subr.mxu0 0.0
    %347 = vmatpush1.msra.mxu0 0.0
    %348 = vmatprep.subr.mxu0 0.0
    %349 = vmatpush1.msra.mxu0 0.0
    %350 = vmatprep.subr.mxu0 0.0
    %351 = vmatpush1.msra.mxu0 0.0
    %352 = vmatprep.subr.mxu0 0.0
    %353 = vmatpush1.msra.mxu0 0.0
    %354 = vmatprep.subr.mxu0 0.0
    %355 = vmatpush1.msra.mxu0 0.0
    %356 = vmatprep.subr.mxu0 0.0
    %357 = vmatpush1.msra.mxu0 %v317
    %358 = vmatprep.subr.mxu0 0.0
    %359 = vmatpush2.msra.mxu0 0.0
    %360 = vmatprep.subr.mxu0 0.0
    %361 = vmatpush2.msra.mxu0 0.0
    %362 = vmatprep.subr.mxu0 0.0
    %363 = vmatpush2.msra.mxu0 0.0
    %364 = vmatprep.subr.mxu0 0.0
    %365 = vmatpush2.msra.mxu0 0.0
    %366 = vmatprep.subr.mxu0 0.0
    %367 = vmatpush2.msra.mxu0 0.0
    %368 = vmatprep.subr.mxu0 0.0
    %369 = vmatpush2.msra.mxu0 0.0
    %370 = vmatprep.subr.mxu0 0.0
    %371 = vmatpush2.msra.mxu0 0.0
    %372 = vmatprep.subr.mxu0 0.0
    %373 = vmatpush2.msra.mxu0 0.0
    %374 = vmatprep.subr.mxu0 0.0
    %375 = vmatpush2.msra.mxu0 0.0
    %376 = vmatprep.subr.mxu0 0.0
    %377 = vmatpush2.msra.mxu0 0.0
    %378 = vmatprep.subr.mxu0 0.0
    %379 = vmatpush2.msra.mxu0 0.0
    %380 = vmatprep.subr.mxu0 0.0
    %381 = vmatpush2.msra.mxu0 0.0
    %382 = vmatprep.subr.mxu0 0.0
    %383 = vmatpush2.msra.mxu0 0.0
    %384 = vmatprep.subr.mxu0 0.0
    %385 = vmatpush2.msra.mxu0 0.0
    %386 = vmatprep.subr.mxu0 0.0
    %387 = vmatpush2.msra.mxu0 0.0
    %388 = vmatprep.subr.mxu0 0.0
    %389 = vmatpush2.msra.mxu0 0.0
    %390 = vmatprep.mubr.f32.mxu0 0.0
    %391 = vmatmul.mubr.f32.gmra.mxu0 %v82
    %v392 = vpop.f32.mrf.mxu0
    %v393 = vadd.f32 %v317, %v392
    %v394 = vpop.f32.mrf.mxu0
    %395 = vdwg.mxu0
    %396 = vmatprep.subr.mxu0 0.0
    %397 = vmatpush1.msra.mxu0 0.0
    %398 = vmatprep.subr.mxu0 0.0
    %399 = vmatpush1.msra.mxu0 0.0
    %400 = vmatprep.subr.mxu0 0.0
    %401 = vmatpush1.msra.mxu0 0.0
    %402 = vmatprep.subr.mxu0 0.0
    %403 = vmatpush1.msra.mxu0 0.0
    %404 = vmatprep.subr.mxu0 0.0
    %405 = vmatpush1.msra.mxu0 0.0
    %406 = vmatprep.subr.mxu0 0.0
    %407 = vmatpush1.msra.mxu0 0.0
    %408 = vmatprep.subr.mxu0 0.0
    %409 = vmatpush1.msra.mxu0 0.0
    %410 = vmatprep.subr.mxu0 0.0
    %411 = vmatpush1.msra.mxu0 0.0
    %412 = vmatprep.subr.mxu0 0.0
    %413 = vmatpush1.msra.mxu0 0.0
    %414 = vmatprep.subr.mxu0 0.0
    %415 = vmatpush1.msra.mxu0 0.0
    %416 = vmatprep.subr.mxu0 0.0
    %417 = vmatpush1.msra.mxu0 0.0
    %418 = vmatprep.subr.mxu0 0.0
    %419 = vmatpush1.msra.mxu0 0.0
    %420 = vmatprep.subr.mxu0 0.0
    %421 = vmatpush1.msra.mxu0 0.0
    %422 = vmatprep.subr.mxu0 0.0
    %423 = vmatpush1.msra.mxu0 0.0
    %424 = vmatprep.subr.mxu0 0.0
    %425 = vmatpush1.msra.mxu0 0.0
    %426 = vmatprep.subr.mxu0 0.0
    %427 = vmatpush1.msra.mxu0 %v318
    %428 = vmatprep.subr.mxu0 0.0
    %429 = vmatpush2.msra.mxu0 0.0
    %430 = vmatprep.subr.mxu0 0.0
    %431 = vmatpush2.msra.mxu0 0.0
    %432 = vmatprep.subr.mxu0 0.0
    %433 = vmatpush2.msra.mxu0 0.0
    %434 = vmatprep.subr.mxu0 0.0
    %435 = vmatpush2.msra.mxu0 0.0
    %436 = vmatprep.subr.mxu0 0.0
    %437 = vmatpush2.msra.mxu0 0.0
    %438 = vmatprep.subr.mxu0 0.0
    %439 = vmatpush2.msra.mxu0 0.0
    %440 = vmatprep.subr.mxu0 0.0
    %441 = vmatpush2.msra.mxu0 0.0
    %442 = vmatprep.subr.mxu0 0.0
    %443 = vmatpush2.msra.mxu0 0.0
    %444 = vmatprep.subr.mxu0 0.0
    %445 = vmatpush2.msra.mxu0 0.0
    %446 = vmatprep.subr.mxu0 0.0
    %447 = vmatpush2.msra.mxu0 0.0
    %448 = vmatprep.subr.mxu0 0.0
    %449 = vmatpush2.msra.mxu0 0.0
    %450 = vmatprep.subr.mxu0 0.0
    %451 = vmatpush2.msra.mxu0 0.0
    %452 = vmatprep.subr.mxu0 0.0
    %453 = vmatpush2.msra.mxu0 0.0
    %454 = vmatprep.subr.mxu0 0.0
    %455 = vmatpush2.msra.mxu0 0.0
    %456 = vmatprep.subr.mxu0 0.0
    %457 = vmatpush2.msra.mxu0 0.0
    %458 = vmatprep.subr.mxu0 0.0
    %459 = vmatpush2.msra.mxu0 0.0
    %460 = vmatprep.mubr.f32.mxu0 0.0
    %461 = vmatmul.mubr.f32.gmra.mxu0 %v155
    %v462 = vpop.f32.mrf.mxu0
    %v463 = vadd.f32 %v318, %v462
    %v464 = vpop.f32.mrf.mxu0
    %465 = vdwg.mxu0
    %v467 = vlaneseq
    %v468 = vshrl.u32 %v467, 7
    %v469 = vsub.s32 0, %v468
    %v470 = vrot.slane %v325, %v469
    %v473 = vsel %vm233, %v393, 0
    %v476 = vsel %vm233, %v463, 0
    %478 = vmatprep.subr.mxu0 0.0
    %479 = vmatpush1.msra.mxu0 0.0
    %480 = vmatprep.subr.mxu0 0.0
    %481 = vmatpush1.msra.mxu0 0.0
    %482 = vmatprep.subr.mxu0 0.0
    %483 = vmatpush1.msra.mxu0 0.0
    %484 = vmatprep.subr.mxu0 0.0
    %485 = vmatpush1.msra.mxu0 0.0
    %486 = vmatprep.subr.mxu0 0.0
    %487 = vmatpush1.msra.mxu0 0.0
    %488 = vmatprep.subr.mxu0 0.0
    %489 = vmatpush1.msra.mxu0 0.0
    %490 = vmatprep.subr.mxu0 0.0
    %491 = vmatpush1.msra.mxu0 0.0
    %492 = vmatprep.subr.mxu0 0.0
    %493 = vmatpush1.msra.mxu0 0.0
    %494 = vmatprep.subr.mxu0 0.0
    %495 = vmatpush1.msra.mxu0 0.0
    %496 = vmatprep.subr.mxu0 0.0
    %497 = vmatpush1.msra.mxu0 0.0
    %498 = vmatprep.subr.mxu0 0.0
    %499 = vmatpush1.msra.mxu0 0.0
    %500 = vmatprep.subr.mxu0 0.0
    %501 = vmatpush1.msra.mxu0 0.0
    %502 = vmatprep.subr.mxu0 0.0
    %503 = vmatpush1.msra.mxu0 %v323
    %504 = vmatprep.subr.mxu0 0.0
    %505 = vmatpush1.msra.mxu0 %v322
    %506 = vmatprep.subr.mxu0 0.0
    %507 = vmatpush1.msra.mxu0 %v321
    %508 = vmatprep.subr.mxu0 0.0
    %509 = vmatpush1.msra.mxu0 %v320
    %510 = vmatprep.subr.mxu0 0.0
    %511 = vmatpush2.msra.mxu0 0.0
    %512 = vmatprep.subr.mxu0 0.0
    %513 = vmatpush2.msra.mxu0 0.0
    %514 = vmatprep.subr.mxu0 0.0
    %515 = vmatpush2.msra.mxu0 0.0
    %516 = vmatprep.subr.mxu0 0.0
    %517 = vmatpush2.msra.mxu0 0.0
    %518 = vmatprep.subr.mxu0 0.0
    %519 = vmatpush2.msra.mxu0 0.0
    %520 = vmatprep.subr.mxu0 0.0
    %521 = vmatpush2.msra.mxu0 0.0
    %522 = vmatprep.subr.mxu0 0.0
    %523 = vmatpush2.msra.mxu0 0.0
    %524 = vmatprep.subr.mxu0 0.0
    %525 = vmatpush2.msra.mxu0 0.0
    %526 = vmatprep.subr.mxu0 0.0
    %527 = vmatpush2.msra.mxu0 0.0
    %528 = vmatprep.subr.mxu0 0.0
    %529 = vmatpush2.msra.mxu0 0.0
    %530 = vmatprep.subr.mxu0 0.0
    %531 = vmatpush2.msra.mxu0 0.0
    %532 = vmatprep.subr.mxu0 0.0
    %533 = vmatpush2.msra.mxu0 0.0
    %534 = vmatprep.subr.mxu0 0.0
    %535 = vmatpush2.msra.mxu0 0.0
    %536 = vmatprep.subr.mxu0 0.0
    %537 = vmatpush2.msra.mxu0 0.0
    %538 = vmatprep.subr.mxu0 0.0
    %539 = vmatpush2.msra.mxu0 0.0
    %540 = vmatprep.subr.mxu0 0.0
    %541 = vmatpush2.msra.mxu0 0.0
    %542 = vmatprep.mubr.f32.mxu0 0.0
    %543 = vmatmul.mubr.f32.gmra.mxu0 %v473
    %v544 = vpop.f32.mrf.mxu0
    %v545 = vadd.f32 %v470, %v544
    %v546 = vpop.f32.mrf.mxu0
    %547 = vmatprep.mubr.f32.mxu0 0.0
    %548 = vmatmul.mubr.f32.gmra.mxu0 %v476
    %v549 = vpop.f32.mrf.mxu0
    %v550 = vadd.f32 %v470, %v549
    %v551 = vpop.f32.mrf.mxu0
    %552 = vdwg.mxu0
    %v553 = vmul.f32 %v545, %v73
    %v554 = vmul.f32 %v550, %v75
    %v555 = vmax.f32 %v553, 0.0
    %v556 = vmax.f32 %v554, 0.0
    %557 = vst.msk [vmem:[#allocation8] sm:$0xff] %vm233, %v555
    %558 = vst.msk [vmem:[#allocation8 + $0x8] sm:$0xff] %vm233, %v556
    // Predicated region
    $region30: #{tpu_custom_call.1} parent=1 // pred_check
      _
    $region31: #{tpu_custom_call.1} parent=1 // pred_check_branch
      %560 = sbr.rel (0) target = $region33
    $region32: #{tpu_custom_call.1} parent=1 // pred_region
      %s562 = ssub.s32 256, 256
      %563 = vsyncadd [#allocation4], %s562
      %s564 = sshll.u32 [#allocation8], 4
      %s565 = int_to_ptr.vmem [resolvable:$true] %s564
      %570 = dma.vmem_to_hbm [thread:$0]  %s565, 256, %s4, [#allocation4], 128, 128, 8
    $region33: #{tpu_custom_call.1} parent=1 // pred_fallthru
      _
    // Predicated region
    $region34: #{tpu_custom_call.1} parent=1 // pred_check
      _
    $region35: #{tpu_custom_call.1} parent=1 // pred_check_branch
      %572 = sbr.rel (0) target = $region37
    $region36: #{tpu_custom_call.1} parent=1 // pred_region
      %573 = dma.done [#allocation4], 256
    $region37: #{tpu_custom_call.1} parent=1 // pred_fallthru
      _
    %574 = vsyncpa [#allocation3], 1
    %575 = vsyncpa [#allocation6], 1
    %576 = vsyncpa [#allocation4], 1

</llo_original>
